<compile_context>
chip_gen: v7x
topology: tpu7x:2x2x1
jax: 0.10.0
libtpu: 0.0.40
codegen_flags: <defaults>
</compile_context>

<pallas_src>
import functools

import jax
import jax.numpy as jnp
from jax.experimental import pallas as pl
from jax.experimental.pallas import tpu as pltpu


def _round_up(v: int, m: int) -> int:
    return (v + m - 1) // m * m


def neuron_kernel(x_ref, w_ref, b_ref, o_ref):
    # x_ref: (TILE_B, N_pad)
    # w_ref: (N_pad, N_pad), PyTorch (out_features, in_features) layout
    # b_ref: (1, N_pad)
    # o_ref: (TILE_B, N_pad)
    x = x_ref[...].astype(jnp.float32)
    w = w_ref[...].astype(jnp.float32)
    b = b_ref[...].astype(jnp.float32)
    # Linear: y = x @ W^T + b, contracting x's dim 1 with W's dim 1
    # (the in_features axis) — no physical transpose needed.
    y = jax.lax.dot_general(
        x, w,
        dimension_numbers=(((1,), (1,)), ((), ())),
        preferred_element_type=jnp.float32,
    ) + b
    o_ref[...] = jnp.tanh(y).astype(o_ref.dtype)


@functools.partial(jax.jit, static_argnames=("tile_b",))
def neuron_forward(x, w, b, *, tile_b: int = 512):
    """x: [batch, n], w: [n, n] in (out, in) layout, b: [n].

    Returns tanh(x @ w.T + b), matching torch.nn.Linear + nn.Tanh.
    """
    batch, n = x.shape
    assert w.shape == (n, n) and b.shape == (n,)

    # Pad feature dim to 128 lanes, batch tile to 8 sublanes (f32).
    n_pad = _round_up(max(n, 1), 128)
    tb = _round_up(max(8, min(tile_b, _round_up(batch, 8))), 8)
    b_pad = _round_up(batch, tb)

    x_p = jnp.zeros((b_pad, n_pad), x.dtype).at[:batch, :n].set(x)
    w_p = jnp.zeros((n_pad, n_pad), w.dtype).at[:n, :n].set(w)
    bias_p = jnp.zeros((1, n_pad), b.dtype).at[0, :n].set(b)

    grid = (b_pad // tb,)

    out_p = pl.pallas_call(
        neuron_kernel,
        out_shape=jax.ShapeDtypeStruct((b_pad, n_pad), x.dtype),
        grid=grid,
        in_specs=[
            pl.BlockSpec((tb, n_pad), lambda i: (i, 0)),      # x: tiled over batch
            pl.BlockSpec((n_pad, n_pad), lambda i: (0, 0)),   # W: resident in VMEM
            pl.BlockSpec((1, n_pad), lambda i: (0, 0)),       # bias: resident in VMEM
        ],
        out_specs=pl.BlockSpec((tb, n_pad), lambda i: (i, 0)),
        compiler_params=pltpu.CompilerParams(
            dimension_semantics=("parallel",),
        ),
    )(x_p, w_p, bias_p)

    return out_p[:batch, :n]


if __name__ == "__main__":
    neuron_size = 4
    batch = 8

    key = jax.random.PRNGKey(0)
    kx, kw, kb = jax.random.split(key, 3)

    # Deterministic parameter init (mimics nn.Linear's uniform(-1/sqrt(n), 1/sqrt(n))).
    bound = 1.0 / (neuron_size ** 0.5)
    W = jax.random.uniform(kw, (neuron_size, neuron_size), jnp.float32, -bound, bound)
    b = jax.random.uniform(kb, (neuron_size,), jnp.float32, -bound, bound)

    x = jax.random.normal(kx, (batch, neuron_size), jnp.float32)

    out = neuron_forward(x, W, b)
    out = jax.block_until_ready(out)

    # Reference in plain JAX (torch.nn.Linear semantics: x @ W^T + b).
    ref = jnp.tanh(x @ W.T + b)
    assert out.shape == ref.shape, "shape mismatch vs reference"
    assert jnp.allclose(out, ref, atol=1e-5, rtol=1e-5), "mismatch vs reference"

    print("KERNEL_OK")
</pallas_src>

<mosaic_0001>
module attributes {stable_mosaic.version = 11 : i64} {
  func.func @neuron_kernel(%arg0: i32, %arg1: memref<8x128xf32, #tpu.memory_space<vmem>>, %arg2: memref<128x128xf32, #tpu.memory_space<vmem>>, %arg3: memref<1x128xf32, #tpu.memory_space<vmem>>, %arg4: memref<8x128xf32, #tpu.memory_space<vmem>>) attributes {dimension_semantics = [#tpu.dimension_semantics<parallel>], iteration_bounds = array<i64: 1>, scalar_prefetch = 0 : i64, scratch_operands = 0 : i64, tpu.core_type = #tpu.core_type<tc>, window_params = [{transform_indices = @transform_0, window_bounds = array<i64: 8, 128>}, {pipeline_mode = #tpu.pipeline_mode<synchronous>, transform_indices = @transform_1, window_bounds = array<i64: 128, 128>}, {pipeline_mode = #tpu.pipeline_mode<synchronous>, transform_indices = @transform_2, window_bounds = array<i64: 1, 128>}, {transform_indices = @transform_3, window_bounds = array<i64: 8, 128>}]} {
    %c0 = arith.constant 0 : index
    %c0_0 = arith.constant 0 : index
    %0 = vector.load %arg1[%c0, %c0_0] : memref<8x128xf32, #tpu.memory_space<vmem>>, vector<8x128xf32>
    %c0_1 = arith.constant 0 : index
    %c0_2 = arith.constant 0 : index
    %1 = vector.load %arg2[%c0_1, %c0_2] : memref<128x128xf32, #tpu.memory_space<vmem>>, vector<128x128xf32>
    %c0_3 = arith.constant 0 : index
    %c0_4 = arith.constant 0 : index
    %2 = vector.load %arg3[%c0_3, %c0_4] : memref<1x128xf32, #tpu.memory_space<vmem>>, vector<1x128xf32>
    %cst = arith.constant dense<0.000000e+00> : vector<8x128xf32>
    %3 = tpu.matmul %0, %1, %cst {dimension_numbers = #tpu.dot_dimension_numbers<[1], [1], [0], [0], [0, 0, 1, 0], [], []>} : vector<8x128xf32>, vector<128x128xf32>, vector<8x128xf32> -> vector<8x128xf32>
    %4 = vector.broadcast %2 : vector<1x128xf32> to vector<8x128xf32>
    %5 = arith.addf %3, %4 : vector<8x128xf32>
    %6 = math.tanh %5 : vector<8x128xf32>
    %c0_5 = arith.constant 0 : index
    %c0_6 = arith.constant 0 : index
    %7 = vector.load %arg4[%c0_5, %c0_6] : memref<8x128xf32, #tpu.memory_space<vmem>>, vector<8x128xf32>
    tpu.vector_store %arg4[%c0_5, %c0_6], %6 {strides = array<i32>} : memref<8x128xf32, #tpu.memory_space<vmem>>, vector<8x128xf32>,
    return
  }
  func.func @transform_0(%arg0: i32) -> (i32, i32) {
    %c0_i32 = arith.constant 0 : i32
    %c0_i32_0 = arith.constant 0 : i32
    return %arg0, %c0_i32 : i32, i32
  }
  func.func @transform_1(%arg0: i32) -> (i32, i32) {
    %c0_i32 = arith.constant 0 : i32
    %c0_i32_0 = arith.constant 0 : i32
    %c0_i32_1 = arith.constant 0 : i32
    return %c0_i32, %c0_i32_0 : i32, i32
  }
  func.func @transform_2(%arg0: i32) -> (i32, i32) {
    %c0_i32 = arith.constant 0 : i32
    %c0_i32_0 = arith.constant 0 : i32
    %c0_i32_1 = arith.constant 0 : i32
    return %c0_i32, %c0_i32_0 : i32, i32
  }
  func.func @transform_3(%arg0: i32) -> (i32, i32) {
    %c0_i32 = arith.constant 0 : i32
    %c0_i32_0 = arith.constant 0 : i32
    return %arg0, %c0_i32 : i32, i32
  }
}

</mosaic_0001>

<llo_original>
// kernel: neuron_forward.1
$region0: #{neuron_forward.1}
  #allocation0 [shape = 'u32[]', space=smem, size = 0x4, offset = 0x4, fixed_abs, tag = 'smem constant byte address 0x4 - core index']
  #allocation1 [shape = 'u32[144,128]{1,0:T(1,128)}', space=vmem, size = 0x12000, scoped, tag = 'internal scratch']
  %s0 = inlined_call_operand.vmem [shape: f32[8,128], index: 0, kind: input, shape index: {}]
  %s1 = inlined_call_operand.vmem [shape: f32[128,128], index: 1, kind: input, shape index: {}]
  %s2 = inlined_call_operand.vmem [shape: f32[1,128], index: 2, kind: input, shape index: {}]
  %s3 = inlined_call_operand.vmem [shape: f32[8,128], index: 3, kind: output, shape index: {}]
  %s4 = sld [smem:[#allocation0]]
  $region22: #{neuron_forward.1} parent=0
    _
  %s6 = ssub.s32 1, %s4
  %s7 = scalar_select 0, %s6, %s4
  // Predicated region
  $region2: #{neuron_forward.1} parent=0 // pred_check
    _
  $region3: #{neuron_forward.1} parent=0 // pred_check_branch
    %9 = sbr.rel (0) target = $region5
  $region4: #{neuron_forward.1} parent=0 // pred_region
    _
  $region5: #{neuron_forward.1} parent=0 // pred_fallthru
    _
  // Predicated region
  $region6: #{neuron_forward.1} parent=0 // pred_check
    _
  $region7: #{neuron_forward.1} parent=0 // pred_check_branch
    %11 = sbr.rel (0) target = $region9
  $region8: #{neuron_forward.1} parent=0 // pred_region
    _
  $region9: #{neuron_forward.1} parent=0 // pred_fallthru
    _
  // Predicated region
  $region10: #{neuron_forward.1} parent=0 // pred_check
    _
  $region11: #{neuron_forward.1} parent=0 // pred_check_branch
    %13 = sbr.rel (0) target = $region13
  $region12: #{neuron_forward.1} parent=0 // pred_region
    _
  $region13: #{neuron_forward.1} parent=0 // pred_fallthru
    _
  %v14 = vld [vmem:[%s0] sm:$0xff]
  %v15 = vld [vmem:[%s1] sm:$0xff]
  %v16 = vld [vmem:[%s1 + $0x8] sm:$0xff]
  %v17 = vld [vmem:[%s1 + $0x10] sm:$0xff]
  %v18 = vld [vmem:[%s1 + $0x18] sm:$0xff]
  %v19 = vld [vmem:[%s1 + $0x20] sm:$0xff]
  %v20 = vld [vmem:[%s1 + $0x28] sm:$0xff]
  %v21 = vld [vmem:[%s1 + $0x30] sm:$0xff]
  %v22 = vld [vmem:[%s1 + $0x38] sm:$0xff]
  %v23 = vld [vmem:[%s1 + $0x40] sm:$0xff]
  %v24 = vld [vmem:[%s1 + $0x48] sm:$0xff]
  %v25 = vld [vmem:[%s1 + $0x50] sm:$0xff]
  %v26 = vld [vmem:[%s1 + $0x58] sm:$0xff]
  %v27 = vld [vmem:[%s1 + $0x60] sm:$0xff]
  %v28 = vld [vmem:[%s1 + $0x68] sm:$0xff]
  %v29 = vld [vmem:[%s1 + $0x70] sm:$0xff]
  %v30 = vld [vmem:[%s1 + $0x78] sm:$0xff]
  %v31 = vld [vmem:[%s2] sm:$0x1]
  %v33 = vlaneseq
  %v34 = vshrl.u32 %v33, 7
  %v35 = vsub.s32 0, %v34
  %v36 = vrot.slane %v31, %v35
  %38 = vmatprep.subr.mxu0 0.0
  %39 = vmatpush1.xpose.msra.mxu0 %v15
  %40 = vmatprep.subr.mxu0 0.0
  %41 = vmatpush1.xpose.msra.mxu0 %v16
  %42 = vmatprep.subr.mxu0 0.0
  %43 = vmatpush1.xpose.msra.mxu0 %v17
  %44 = vmatprep.subr.mxu0 0.0
  %45 = vmatpush1.xpose.msra.mxu0 %v18
  %46 = vmatprep.subr.mxu0 0.0
  %47 = vmatpush1.xpose.msra.mxu0 %v19
  %48 = vmatprep.subr.mxu0 0.0
  %49 = vmatpush1.xpose.msra.mxu0 %v20
  %50 = vmatprep.subr.mxu0 0.0
  %51 = vmatpush1.xpose.msra.mxu0 %v21
  %52 = vmatprep.subr.mxu0 0.0
  %53 = vmatpush1.xpose.msra.mxu0 %v22
  %54 = vmatprep.subr.mxu0 0.0
  %55 = vmatpush1.xpose.msra.mxu0 %v23
  %56 = vmatprep.subr.mxu0 0.0
  %57 = vmatpush1.xpose.msra.mxu0 %v24
  %58 = vmatprep.subr.mxu0 0.0
  %59 = vmatpush1.xpose.msra.mxu0 %v25
  %60 = vmatprep.subr.mxu0 0.0
  %61 = vmatpush1.xpose.msra.mxu0 %v26
  %62 = vmatprep.subr.mxu0 0.0
  %63 = vmatpush1.xpose.msra.mxu0 %v27
  %64 = vmatprep.subr.mxu0 0.0
  %65 = vmatpush1.xpose.msra.mxu0 %v28
  %66 = vmatprep.subr.mxu0 0.0
  %67 = vmatpush1.xpose.msra.mxu0 %v29
  %68 = vmatprep.subr.mxu0 0.0
  %69 = vmatpush1.xpose.msra.mxu0 %v30
  %70 = vmatprep.subr.mxu0 0.0
  %71 = vmatpush1.xpose.msra.mxu0 0.0
  %72 = vmatprep.subr.mxu0 0.0
  %73 = vmatpush1.xpose.msra.mxu0 0.0
  %74 = vmatprep.subr.mxu0 0.0
  %75 = vmatpush1.xpose.msra.mxu0 0.0
  %76 = vmatprep.subr.mxu0 0.0
  %77 = vmatpush1.xpose.msra.mxu0 0.0
  %78 = vmatprep.subr.mxu0 0.0
  %79 = vmatpush1.xpose.msra.mxu0 0.0
  %80 = vmatprep.subr.mxu0 0.0
  %81 = vmatpush1.xpose.msra.mxu0 0.0
  %82 = vmatprep.subr.mxu0 0.0
  %83 = vmatpush1.xpose.msra.mxu0 0.0
  %84 = vmatprep.subr.mxu0 0.0
  %85 = vmatpush1.xpose.msra.mxu0 0.0
  %86 = vmatprep.subr.mxu0 0.0
  %87 = vmatpush1.xpose.msra.mxu0 0.0
  %88 = vmatprep.subr.mxu0 0.0
  %89 = vmatpush1.xpose.msra.mxu0 0.0
  %90 = vmatprep.subr.mxu0 0.0
  %91 = vmatpush1.xpose.msra.mxu0 0.0
  %92 = vmatprep.subr.mxu0 0.0
  %93 = vmatpush1.xpose.msra.mxu0 0.0
  %94 = vmatprep.subr.mxu0 0.0
  %95 = vmatpush1.xpose.msra.mxu0 0.0
  %96 = vmatprep.subr.mxu0 0.0
  %97 = vmatpush1.xpose.msra.mxu0 0.0
  %98 = vmatprep.subr.mxu0 0.0
  %99 = vmatpush1.xpose.msra.mxu0 0.0
  %100 = vmatprep.subr.mxu0 0.0
  %101 = vmatpush1.xpose.msra.mxu0 0.0
  %102 = vmatprep.mubr.f32.mxu0 0.0
  %103 = vmatmul.mubr.f32.gmra.mrb[0].mxu0 %v14
  %v104 = vpop.f32.mrb[0].mxu0
  %v105 = vadd.f32 %v36, %v104
  %v106 = vpop.f32.mrb[0].mxu0
  %107 = vdwg.mxu0
  %v108 = vtanh.pop %v105
  %109 = vst [vmem:[%s3] sm:$0xff] %v108
  // Predicated region
  $region14: #{neuron_forward.1} parent=0 // pred_check
    _
  $region15: #{neuron_forward.1} parent=0 // pred_check_branch
    %111 = sbr.rel (0) target = $region17
  $region16: #{neuron_forward.1} parent=0 // pred_region
    _
  $region17: #{neuron_forward.1} parent=0 // pred_fallthru
    _
  // Predicated region
  $region18: #{neuron_forward.1} parent=0 // pred_check
    _
  $region19: #{neuron_forward.1} parent=0 // pred_check_branch
    %113 = sbr.rel (0) target = $region21
  $region20: #{neuron_forward.1} parent=0 // pred_region
    _
  $region21: #{neuron_forward.1} parent=0 // pred_fallthru
    _

</llo_original>
